<compile_context>
chip_gen: v7x
topology: tpu7x:2x2x1
jax: 0.10.0
libtpu: 0.0.40
codegen_flags: <defaults>
</compile_context>

<pallas_src>
import jax
import jax.numpy as jnp
from jax import lax
from jax.experimental import pallas as pl
from jax.experimental.pallas import tpu as pltpu


_INV_SQRT2 = 0.7071067811865476


def _gelu_exact_f32(x):
    # torch.nn.GELU() default: 0.5 * x * (1 + erf(x / sqrt(2))), computed in f32.
    return 0.5 * x * (1.0 + lax.erf(x * _INV_SQRT2))


def _ffn_kernel_single(x_ref, w1_ref, b1_ref, w2_ref, b2_ref, o_ref):
    """Single hidden slab: write the result directly, no accumulator RMW."""
    h = jnp.dot(x_ref[...], w1_ref[...], preferred_element_type=jnp.float32)
    h = _gelu_exact_f32(h + b1_ref[...].astype(jnp.float32))
    out = jnp.dot(h.astype(w2_ref.dtype), w2_ref[...],
                  preferred_element_type=jnp.float32)
    o_ref[...] = (out + b2_ref[...].astype(jnp.float32)).astype(o_ref.dtype)


def _ffn_kernel_acc(x_ref, w1_ref, b1_ref, w2_ref, b2_ref, o_ref, acc_ref):
    """Grid = (row tiles, hidden slabs). Accumulate c_proj partials in f32."""
    j = pl.program_id(1)

    @pl.when(j == 0)
    def _init():
        acc_ref[...] = jnp.zeros_like(acc_ref)

    # c_fc on this hidden slab: native-dtype operands, f32 MXU accumulation.
    h = jnp.dot(x_ref[...], w1_ref[...], preferred_element_type=jnp.float32)
    h = _gelu_exact_f32(h + b1_ref[...].astype(jnp.float32))

    # Partial c_proj contribution from this hidden slab, accumulated on-chip.
    acc_ref[...] += jnp.dot(h.astype(w2_ref.dtype), w2_ref[...],
                            preferred_element_type=jnp.float32)

    @pl.when(j == pl.num_programs(1) - 1)
    def _finalize():
        o_ref[...] = (acc_ref[...] + b2_ref[...].astype(jnp.float32)).astype(o_ref.dtype)


def _round_up(a, b):
    return (a + b - 1) // b * b


def _default_vmem_budget():
    """Per-generation scoped-VMEM budget with headroom for compiler scratch."""
    cap = 64 * 1024 * 1024
    try:
        info = pltpu.get_tpu_info()
        cap = int(getattr(info, "vmem_capacity_bytes", cap))
    except Exception:
        pass
    # ~50 MiB on v7x (64 MiB/TC), capped at ~100 MiB on 128-MiB parts (v5e/v6e).
    return min(int(cap * 0.78), 100 * 1024 * 1024)


def _pick_th(H, th_req, tm, C, itemsize, vmem_budget):
    """Largest hidden slab (multiple of 128) whose double-buffered working set
    fits the VMEM budget. Prefer a divisor of H (no padding); otherwise pad H
    up to a slab multiple (zero padding is mathematically inert)."""
    th_req = max(128, (th_req // 128) * 128)

    def fits(t):
        ws = (2 * 2 * C * t * itemsize       # W1 + W2 slabs, double-buffered
              + 2 * 2 * tm * C * itemsize    # x + out row tiles, double-buffered
              + tm * C * 4                   # f32 accumulator scratch
              + 2 * (t + C) * itemsize)      # bias slabs
        return ws <= vmem_budget

    t = th_req
    while t > 128 and not fits(t):
        t -= 128
    d = t
    while d >= 128:
        if H % d == 0:
            return d, H
        d -= 128
    return t, _round_up(H, t)


def feed_forward(x, w_fc, b_fc, w_proj, b_proj, *, tm=256, th=512,
                 vmem_limit_bytes=None):
    """x: [B, T, C]; w_fc: [C, H]; b_fc: [H]; w_proj: [H, C]; b_proj: [C]."""
    B, T, C = x.shape
    H = w_fc.shape[1]
    M = B * T
    dtype = x.dtype
    itemsize = jnp.dtype(dtype).itemsize

    if vmem_limit_bytes is None:
        vmem_limit_bytes = _default_vmem_budget()

    # Row tile: multiple of 8 sublanes; guarantee >= 2 tiles when M allows so
    # the "parallel" row axis can be sharded across both v7x TensorCores.
    tm = max(8, min((tm // 8) * 8, _round_up(M, 8)))
    if M > 8 and _round_up(M, tm) // tm < 2:
        tm = max(8, (_round_up(M, 8) // 2 // 8) * 8)
    M_pad = _round_up(M, tm)

    # Lane-dense channel dim (output last dim a multiple of 128).
    C_pad = _round_up(C, 128)

    # Hidden slab bounded by the VMEM budget; pad H only if no divisor works.
    th, H_pad = _pick_th(H, th, tm, C_pad, itemsize, vmem_limit_bytes)

    # Zero-pad operands; padded rows/cols contribute zeros and are sliced off.
    x2 = x.reshape(M, C)
    if M_pad != M or C_pad != C:
        x2 = jnp.pad(x2, ((0, M_pad - M), (0, C_pad - C)))
    w1 = w_fc
    if C_pad != C or H_pad != H:
        w1 = jnp.pad(w_fc, ((0, C_pad - C), (0, H_pad - H)))
    b1 = (jnp.pad(b_fc, (0, H_pad - H)) if H_pad != H else b_fc).reshape(1, H_pad)
    w2 = w_proj
    if H_pad != H or C_pad != C:
        w2 = jnp.pad(w_proj, ((0, H_pad - H), (0, C_pad - C)))
    b2 = (jnp.pad(b_proj, (0, C_pad - C)) if C_pad != C else b_proj).reshape(1, C_pad)

    grid_m = M_pad // tm
    grid_h = H_pad // th
    grid = (grid_m, grid_h)

    nbytes = lambda a: a.size * a.dtype.itemsize
    cost = pl.CostEstimate(
        flops=4 * M * C * H,                        # two M x C x H matmuls
        transcendentals=M * H,                      # erf per hidden activation
        bytes_accessed=(nbytes(x2)
                        + grid_m * (nbytes(w1) + nbytes(w2))   # weights re-streamed per row tile
                        + nbytes(b1) + nbytes(b2)
                        + M_pad * C_pad * itemsize),
    )

    in_specs = [
        pl.BlockSpec((tm, C_pad), lambda i, j: (i, 0)),   # x rows (resident over j)
        pl.BlockSpec((C_pad, th), lambda i, j: (0, j)),   # W1 column slab
        pl.BlockSpec((1, th), lambda i, j: (0, j)),       # b1 slab
        pl.BlockSpec((th, C_pad), lambda i, j: (j, 0)),   # W2 row slab
        pl.BlockSpec((1, C_pad), lambda i, j: (0, 0)),    # b2 (constant)
    ]
    out_spec = pl.BlockSpec((tm, C_pad), lambda i, j: (i, 0))

    if grid_h == 1:
        kernel = _ffn_kernel_single
        scratch = []
    else:
        kernel = _ffn_kernel_acc
        scratch = [pltpu.VMEM((tm, C_pad), jnp.float32)]

    out = pl.pallas_call(
        kernel,
        out_shape=jax.ShapeDtypeStruct((M_pad, C_pad), dtype),
        grid_spec=pltpu.PrefetchScalarGridSpec(
            num_scalar_prefetch=0,
            grid=grid,
            in_specs=in_specs,
            out_specs=out_spec,
            scratch_shapes=scratch,
        ),
        compiler_params=pltpu.CompilerParams(
            dimension_semantics=("parallel", "arbitrary"),
            vmem_limit_bytes=vmem_limit_bytes,
        ),
        cost_estimate=cost,
    )(x2, w1, b1, w2, b2)

    return out[:M, :C].reshape(B, T, C)


def _reference(x, w_fc, b_fc, w_proj, b_proj):
    hp = lax.Precision.HIGHEST
    h = jnp.einsum("btc,ch->bth", x, w_fc, precision=hp) + b_fc
    h = 0.5 * h * (1.0 + lax.erf(h * _INV_SQRT2))
    return jnp.einsum("bth,hc->btc", h, w_proj, precision=hp) + b_proj


if __name__ == "__main__":
    # Small but kernel-friendly config: C multiple of 128 (lane-dense output),
    # M = B*T = 128 rows -> two 64-row tiles (megacore), H tiled in 1 or 2 slabs.
    n_embd = 128
    hidden = 4 * n_embd      # 512
    B, T = 2, 64             # M = 128

    key = jax.random.PRNGKey(0)
    kx, k1, k2, k3, k4 = jax.random.split(key, 5)

    x = jax.random.normal(kx, (B, T, n_embd), dtype=jnp.float32)
    w_fc = jax.random.normal(k1, (n_embd, hidden), dtype=jnp.float32) / jnp.sqrt(n_embd)
    b_fc = jax.random.normal(k2, (hidden,), dtype=jnp.float32) * 0.02
    w_proj = jax.random.normal(k3, (hidden, n_embd), dtype=jnp.float32) / jnp.sqrt(hidden)
    b_proj = jax.random.normal(k4, (n_embd,), dtype=jnp.float32) * 0.02

    # f32 path with th=256 -> two hidden slabs (exercises the accumulating kernel).
    y = feed_forward(x, w_fc, b_fc, w_proj, b_proj, th=256)
    jax.block_until_ready(y)
    y_ref = _reference(x, w_fc, b_fc, w_proj, b_proj)
    assert y.shape == (B, T, n_embd)
    assert jnp.allclose(y, y_ref, atol=1e-3, rtol=1e-3), "f32 mismatch vs reference"

    # bf16 path with defaults -> single hidden slab (exercises the fast path);
    # native bf16 MXU matmuls with f32 accumulation.
    xb, w1b, b1b, w2b, b2b = (a.astype(jnp.bfloat16)
                              for a in (x, w_fc, b_fc, w_proj, b_proj))
    yb = feed_forward(xb, w1b, b1b, w2b, b2b)
    jax.block_until_ready(yb)
    yb_ref = _reference(*(a.astype(jnp.float32) for a in (xb, w1b, b1b, w2b, b2b)))
    assert jnp.allclose(yb.astype(jnp.float32), yb_ref, atol=5e-2, rtol=5e-2), \
        "bf16 mismatch vs reference"

    print("KERNEL_OK")
</pallas_src>

<mosaic_0001>
module attributes {stable_mosaic.version = 11 : i64} {
  func.func @_ffn_kernel_acc(%arg0: i32, %arg1: i32, %arg2: memref<64x128xf32, #tpu.memory_space<vmem>>, %arg3: memref<128x256xf32, #tpu.memory_space<vmem>>, %arg4: memref<1x256xf32, #tpu.memory_space<vmem>>, %arg5: memref<256x128xf32, #tpu.memory_space<vmem>>, %arg6: memref<1x128xf32, #tpu.memory_space<vmem>>, %arg7: memref<64x128xf32, #tpu.memory_space<vmem>>, %arg8: memref<64x128xf32, #tpu.memory_space<vmem>>) attributes {dimension_semantics = [#tpu.dimension_semantics<parallel>, #tpu.dimension_semantics<arbitrary>], iteration_bounds = array<i64: 2, 2>, scalar_prefetch = 0 : i64, scratch_operands = 1 : i64, tpu.core_type = #tpu.core_type<tc>, window_params = [{transform_indices = @transform_0, window_bounds = array<i64: 64, 128>}, {transform_indices = @transform_1, window_bounds = array<i64: 128, 256>}, {transform_indices = @transform_2, window_bounds = array<i64: 1, 256>}, {transform_indices = @transform_3, window_bounds = array<i64: 256, 128>}, {pipeline_mode = #tpu.pipeline_mode<synchronous>, transform_indices = @transform_4, window_bounds = array<i64: 1, 128>}, {transform_indices = @transform_5, window_bounds = array<i64: 64, 128>}]} {
    %c0_i32 = arith.constant 0 : i32
    %0 = arith.cmpi eq, %arg1, %c0_i32 : i32
    %1 = arith.extui %0 : i1 to i32
    %c0_i32_0 = arith.constant 0 : i32
    %2 = arith.cmpi ne, %1, %c0_i32_0 : i32
    scf.if %2 {
      %cst_17 = arith.constant 0.000000e+00 : f32
      %25 = vector.broadcast %cst_17 : f32 to vector<64x128xf32>
      %c0_18 = arith.constant 0 : index
      %c0_19 = arith.constant 0 : index
      %26 = vector.load %arg8[%c0_18, %c0_19] : memref<64x128xf32, #tpu.memory_space<vmem>>, vector<64x128xf32>
      tpu.vector_store %arg8[%c0_18, %c0_19], %25 {strides = array<i32>} : memref<64x128xf32, #tpu.memory_space<vmem>>, vector<64x128xf32>,
    } else {
    }
    %c0 = arith.constant 0 : index
    %c0_1 = arith.constant 0 : index
    %3 = vector.load %arg2[%c0, %c0_1] : memref<64x128xf32, #tpu.memory_space<vmem>>, vector<64x128xf32>
    %c0_2 = arith.constant 0 : index
    %c0_3 = arith.constant 0 : index
    %4 = vector.load %arg3[%c0_2, %c0_3] : memref<128x256xf32, #tpu.memory_space<vmem>>, vector<128x256xf32>
    %cst = arith.constant dense<0.000000e+00> : vector<64x256xf32>
    %5 = tpu.matmul %3, %4, %cst {dimension_numbers = #tpu.dot_dimension_numbers<[1], [0], [0], [1], [0, 0, 1, 1], [], []>} : vector<64x128xf32>, vector<128x256xf32>, vector<64x256xf32> -> vector<64x256xf32>
    %c0_4 = arith.constant 0 : index
    %c0_5 = arith.constant 0 : index
    %6 = vector.load %arg4[%c0_4, %c0_5] : memref<1x256xf32, #tpu.memory_space<vmem>>, vector<1x256xf32>
    %7 = vector.broadcast %6 : vector<1x256xf32> to vector<64x256xf32>
    %8 = arith.addf %5, %7 : vector<64x256xf32>
    %cst_6 = arith.constant 5.000000e-01 : f32
    %9 = vector.broadcast %cst_6 : f32 to vector<64x256xf32>
    %10 = arith.mulf %9, %8 : vector<64x256xf32>
    %cst_7 = arith.constant 0.707106769 : f32
    %11 = vector.broadcast %cst_7 : f32 to vector<64x256xf32>
    %12 = arith.mulf %8, %11 : vector<64x256xf32>
    %13 = math.erf %12 : vector<64x256xf32>
    %cst_8 = arith.constant 1.000000e+00 : f32
    %14 = vector.broadcast %cst_8 : f32 to vector<64x256xf32>
    %15 = arith.addf %14, %13 : vector<64x256xf32>
    %16 = arith.mulf %10, %15 : vector<64x256xf32>
    %c0_9 = arith.constant 0 : index
    %c0_10 = arith.constant 0 : index
    %17 = vector.load %arg8[%c0_9, %c0_10] : memref<64x128xf32, #tpu.memory_space<vmem>>, vector<64x128xf32>
    %c0_11 = arith.constant 0 : index
    %c0_12 = arith.constant 0 : index
    %18 = vector.load %arg5[%c0_11, %c0_12] : memref<256x128xf32, #tpu.memory_space<vmem>>, vector<256x128xf32>
    %cst_13 = arith.constant dense<0.000000e+00> : vector<64x128xf32>
    %19 = tpu.matmul %16, %18, %cst_13 {dimension_numbers = #tpu.dot_dimension_numbers<[1], [0], [0], [1], [0, 0, 1, 1], [], []>} : vector<64x256xf32>, vector<256x128xf32>, vector<64x128xf32> -> vector<64x128xf32>
    %20 = arith.addf %17, %19 : vector<64x128xf32>
    %c0_14 = arith.constant 0 : index
    %c0_15 = arith.constant 0 : index
    %21 = vector.load %arg8[%c0_14, %c0_15] : memref<64x128xf32, #tpu.memory_space<vmem>>, vector<64x128xf32>
    tpu.vector_store %arg8[%c0_14, %c0_15], %20 {strides = array<i32>} : memref<64x128xf32, #tpu.memory_space<vmem>>, vector<64x128xf32>,
    %c1_i32 = arith.constant 1 : i32
    %22 = arith.cmpi eq, %arg1, %c1_i32 : i32
    %23 = arith.extui %22 : i1 to i32
    %c0_i32_16 = arith.constant 0 : i32
    %24 = arith.cmpi ne, %23, %c0_i32_16 : i32
    scf.if %24 {
      %c0_17 = arith.constant 0 : index
      %c0_18 = arith.constant 0 : index
      %25 = vector.load %arg8[%c0_17, %c0_18] : memref<64x128xf32, #tpu.memory_space<vmem>>, vector<64x128xf32>
      %c0_19 = arith.constant 0 : index
      %c0_20 = arith.constant 0 : index
      %26 = vector.load %arg6[%c0_19, %c0_20] : memref<1x128xf32, #tpu.memory_space<vmem>>, vector<1x128xf32>
      %27 = vector.broadcast %26 : vector<1x128xf32> to vector<64x128xf32>
      %28 = arith.addf %25, %27 : vector<64x128xf32>
      %c0_21 = arith.constant 0 : index
      %c0_22 = arith.constant 0 : index
      %29 = vector.load %arg7[%c0_21, %c0_22] : memref<64x128xf32, #tpu.memory_space<vmem>>, vector<64x128xf32>
      tpu.vector_store %arg7[%c0_21, %c0_22], %28 {strides = array<i32>} : memref<64x128xf32, #tpu.memory_space<vmem>>, vector<64x128xf32>,
    } else {
    }
    return
  }
  func.func @transform_0(%arg0: i32, %arg1: i32) -> (i32, i32) {
    %c0_i32 = arith.constant 0 : i32
    %c0_i32_0 = arith.constant 0 : i32
    return %arg0, %c0_i32 : i32, i32
  }
  func.func @transform_1(%arg0: i32, %arg1: i32) -> (i32, i32) {
    %c0_i32 = arith.constant 0 : i32
    %c0_i32_0 = arith.constant 0 : i32
    return %c0_i32, %arg1 : i32, i32
  }
  func.func @transform_2(%arg0: i32, %arg1: i32) -> (i32, i32) {
    %c0_i32 = arith.constant 0 : i32
    %c0_i32_0 = arith.constant 0 : i32
    return %c0_i32, %arg1 : i32, i32
  }
  func.func @transform_3(%arg0: i32, %arg1: i32) -> (i32, i32) {
    %c0_i32 = arith.constant 0 : i32
    %c0_i32_0 = arith.constant 0 : i32
    return %arg1, %c0_i32 : i32, i32
  }
  func.func @transform_4(%arg0: i32, %arg1: i32) -> (i32, i32) {
    %c0_i32 = arith.constant 0 : i32
    %c0_i32_0 = arith.constant 0 : i32
    %c0_i32_1 = arith.constant 0 : i32
    return %c0_i32, %c0_i32_0 : i32, i32
  }
  func.func @transform_5(%arg0: i32, %arg1: i32) -> (i32, i32) {
    %c0_i32 = arith.constant 0 : i32
    %c0_i32_0 = arith.constant 0 : i32
    return %arg0, %c0_i32 : i32, i32
  }
}

</mosaic_0001>

<llo_original>
// kernel: tpu_custom_call.1
$region0: #{tpu_custom_call.1}
  #allocation0 [shape = 'u32[]', space=smem, size = 0x4, offset = 0x4, fixed_abs, tag = 'smem constant byte address 0x4 - core index']
  #allocation1 [shape = 'u32[144,128]{1,0:T(1,128)}', space=vmem, size = 0x12000, scoped, tag = 'internal scratch']
  #allocation2 [shape = 'f32[64,128]{1,0:T(8,128)}', space=vmem, size = 0x8000, scoped, tag = 'scratch operand']
  %s0 = inlined_call_operand.hbm [shape: f32[128,128], index: 0, kind: input, shape index: {}]
  %s1 = inlined_call_operand.hbm [shape: f32[128,512], index: 1, kind: input, shape index: {}]
  %s2 = inlined_call_operand.vmem [shape: f32[1,512], index: 2, kind: input, shape index: {}]
  %s3 = inlined_call_operand.hbm [shape: f32[512,128], index: 3, kind: input, shape index: {}]
  %s4 = inlined_call_operand.vmem [shape: f32[1,128], index: 4, kind: input, shape index: {}]
  %s5 = inlined_call_operand.hbm [shape: f32[128,128], index: 5, kind: output, shape index: {}]
  %s6 = sld [smem:[#allocation0]]
  $region73: #{tpu_custom_call.1} parent=0
    _
  %s8 = ssub.s32 1, %s6
  %s9 = scalar_select 0, %s8, %s6
  $region1: #{tpu_custom_call.1} parent=0
    #allocation3 [shape = 'u8[65536]{0}', space=vmem, size = 0x10000, scoped, tag = 'input window, operand 0']
    #allocation4 [shape = 's32[2]{0}', space=sflag, size = 0x8, scoped, tag = 'scoped memory for tpu_custom_call.1']
    #allocation5 [shape = 's32[2]{0}', space=sflag, size = 0x8, scoped, tag = 'scoped memory for tpu_custom_call.1']
    #allocation6 [shape = 'u8[262144]{0}', space=vmem, size = 0x40000, scoped, tag = 'input window, operand 1']
    #allocation7 [shape = 's32[2]{0}', space=sflag, size = 0x8, scoped, tag = 'scoped memory for tpu_custom_call.1']
    #allocation8 [shape = 'u8[262144]{0}', space=vmem, size = 0x40000, scoped, tag = 'input window, operand 3']
    #allocation9 [shape = 'u8[65536]{0}', space=vmem, size = 0x10000, scoped, tag = 'output window, operand 0']
    %10 = vsyncpa [#allocation4], 0
    %s11 = scalar_lea.sflag [#allocation4], 1
    %12 = vsyncpa %s11, 0
    %13 = vsyncpa [#allocation7], 0
    %s14 = scalar_lea.sflag [#allocation7], 1
    %15 = vsyncpa %s14, 0
    %16 = vsyncpa [#allocation5], 0
    %s17 = scalar_lea.sflag [#allocation5], 1
    %18 = vsyncpa %s17, 0
    loop: start=0, step=1, limit=6
    $region2: #{tpu_custom_call.1} parent=1 // loop_pre_header
      _
    $region3: #{tpu_custom_call.1} parent=1 // loop_header
      %s20 = sphi 0, %s24
      %p21 = scmp.ge.s32.totalorder %s20, 6
      %s27 = sphi 0, %s39
      %s28 = sphi 0, %s35
      %s29 = sphi 0, %s27
      %s30 = sphi 0, %s28
      %s31 = sphi 0, %s29
      %s32 = sphi 0, %s30
      %s42 = sphi 0, %s44
      %s45 = sphi 0, %s42
      %s46 = sphi 0, %s45
      %s62 = sphi 0, %s46
      %s68 = sphi 0, %s70
      %s71 = sphi 0, %s68
      %s72 = sphi 0, %s71
      %s88 = sphi 0, %s72
      %s94 = sphi 0, %s96
      %s97 = sphi 0, %s94
      %s98 = sphi 0, %s97
      %s114 = sphi 0, %s98
      %s120 = sphi 0, %s122
      %s123 = sphi 0, %s120
      %s124 = sphi 0, %s123
      %s140 = sphi 0, %s124
      %s144 = sphi 0, %s144
      %s146 = sphi 0, %s144
      %s147 = sphi 0, %s146
      %s161 = sphi 0, %s147
      %s167 = sphi 0, %s169
      %s170 = sphi 0, %s167
      %s171 = sphi 0, %s170
      %s187 = sphi 0, %s171
    $region4: #{tpu_custom_call.1} parent=1 // loop_header_branch
      %23 = sbr.rel (%p21) target = $region8
    $region5: #{tpu_custom_call.1} parent=1 // loop_body
      %s25 = ssub.s32 %s20, 1
      %s26 = ssub.s32 %s20, 2
      %s33 = sadd.s32 1, %s28
      %p34 = scmp.ge.s32.totalorder %s33, 2
      %s35 = scalar_select %p34, 0, %s33
      %s36 = sadd.s32 1, %s27
      %s37 = scalar_select %p34, %s36, %s27
      %p38 = scmp.ge.s32.totalorder %s37, 2
      %s39 = scalar_select %p38, 0, %s37
      %s40 = ssub.s32 %s27, %s39
      %p41 = scmp.eq.s32.totalorder %s40, 0
      %s43 = sadd.s32 %s42, 1
      %s44 = scalar_select %p41, %s42, %s43
      %p47 = pneg %p41
      %p48 = scmp.eq.s32.totalorder %s20, 3
      %p49 = por %p47, %p48
      %p50 = scmp.ne.s32.totalorder %s42, %s45
      %p51 = scmp.eq.s32.totalorder %s20, 0
      %p52 = por %p50, %p51
      %p53 = scmp.ne.s32.totalorder %s42, %s45
      %p54 = scmp.eq.s32.totalorder %s25, 3
      %p55 = por %p53, %p54
      %p56 = scmp.ne.s32.totalorder %s45, %s46
      %p57 = scmp.eq.s32.totalorder %s25, 0
      %p58 = por %p56, %p57
      %p59 = scmp.ne.s32.totalorder %s45, %s46
      %p60 = scmp.eq.s32.totalorder %s26, 3
      %p61 = por %p59, %p60
      %p63 = scmp.ne.s32.totalorder %s46, %s62
      %p64 = scmp.eq.s32.totalorder %s26, 0
      %p65 = por %p63, %p64
      %s66 = ssub.s32 %s28, %s35
      %p67 = scmp.eq.s32.totalorder %s66, 0
      %s69 = sadd.s32 %s68, 1
      %s70 = scalar_select %p67, %s68, %s69
      %p73 = pneg %p67
      %p74 = scmp.eq.s32.totalorder %s20, 3
      %p75 = por %p73, %p74
      %p76 = scmp.ne.s32.totalorder %s68, %s71
      %p77 = scmp.eq.s32.totalorder %s20, 0
      %p78 = por %p76, %p77
      %p79 = scmp.ne.s32.totalorder %s68, %s71
      %p80 = scmp.eq.s32.totalorder %s25, 3
      %p81 = por %p79, %p80
      %p82 = scmp.ne.s32.totalorder %s71, %s72
      %p83 = scmp.eq.s32.totalorder %s25, 0
      %p84 = por %p82, %p83
      %p85 = scmp.ne.s32.totalorder %s71, %s72
      %p86 = scmp.eq.s32.totalorder %s26, 3
      %p87 = por %p85, %p86
      %p89 = scmp.ne.s32.totalorder %s72, %s88
      %p90 = scmp.eq.s32.totalorder %s26, 0
      %p91 = por %p89, %p90
      %s92 = ssub.s32 %s28, %s35
      %p93 = scmp.eq.s32.totalorder %s92, 0
      %s95 = sadd.s32 %s94, 1
      %s96 = scalar_select %p93, %s94, %s95
      %p99 = pneg %p93
      %p100 = scmp.eq.s32.totalorder %s20, 3
      %p101 = por %p99, %p100
      %p102 = scmp.ne.s32.totalorder %s94, %s97
      %p103 = scmp.eq.s32.totalorder %s20, 0
      %p104 = por %p102, %p103
      %p105 = scmp.ne.s32.totalorder %s94, %s97
      %p106 = scmp.eq.s32.totalorder %s25, 3
      %p107 = por %p105, %p106
      %p108 = scmp.ne.s32.totalorder %s97, %s98
      %p109 = scmp.eq.s32.totalorder %s25, 0
      %p110 = por %p108, %p109
      %p111 = scmp.ne.s32.totalorder %s97, %s98
      %p112 = scmp.eq.s32.totalorder %s26, 3
      %p113 = por %p111, %p112
      %p115 = scmp.ne.s32.totalorder %s98, %s114
      %p116 = scmp.eq.s32.totalorder %s26, 0
      %p117 = por %p115, %p116
      %s118 = ssub.s32 %s28, %s35
      %p119 = scmp.eq.s32.totalorder %s118, 0
      %s121 = sadd.s32 %s120, 1
      %s122 = scalar_select %p119, %s120, %s121
      %p125 = pneg %p119
      %p126 = scmp.eq.s32.totalorder %s20, 3
      %p127 = por %p125, %p126
      %p128 = scmp.ne.s32.totalorder %s120, %s123
      %p129 = scmp.eq.s32.totalorder %s20, 0
      %p130 = por %p128, %p129
      %p131 = scmp.ne.s32.totalorder %s120, %s123
      %p132 = scmp.eq.s32.totalorder %s25, 3
      %p133 = por %p131, %p132
      %p134 = scmp.ne.s32.totalorder %s123, %s124
      %p135 = scmp.eq.s32.totalorder %s25, 0
      %p136 = por %p134, %p135
      %p137 = scmp.ne.s32.totalorder %s123, %s124
      %p138 = scmp.eq.s32.totalorder %s26, 3
      %p139 = por %p137, %p138
      %p141 = scmp.ne.s32.totalorder %s124, %s140
      %p142 = scmp.eq.s32.totalorder %s26, 0
      %p143 = por %p141, %p142
      %s145 = sadd.s32 %s144, 1
      %p148 = scmp.eq.s32.totalorder %s20, 3
      %p149 = scmp.ne.s32.totalorder %s144, %s146
      %p150 = scmp.eq.s32.totalorder %s20, 0
      %p151 = por %p149, %p150
      %p152 = scmp.ne.s32.totalorder %s144, %s146
      %p153 = scmp.eq.s32.totalorder %s25, 3
      %p154 = por %p152, %p153
      %p155 = scmp.ne.s32.totalorder %s146, %s147
      %p156 = scmp.eq.s32.totalorder %s25, 0
      %p157 = por %p155, %p156
      %p158 = scmp.ne.s32.totalorder %s146, %s147
      %p159 = scmp.eq.s32.totalorder %s26, 3
      %p160 = por %p158, %p159
      %p162 = scmp.ne.s32.totalorder %s147, %s161
      %p163 = scmp.eq.s32.totalorder %s26, 0
      %p164 = por %p162, %p163
      %s165 = ssub.s32 %s27, %s39
      %p166 = scmp.eq.s32.totalorder %s165, 0
      %s168 = sadd.s32 %s167, 1
      %s169 = scalar_select %p166, %s167, %s168
      %p172 = pneg %p166
      %p173 = scmp.eq.s32.totalorder %s20, 3
      %p174 = por %p172, %p173
      %p175 = scmp.ne.s32.totalorder %s167, %s170
      %p176 = scmp.eq.s32.totalorder %s20, 0
      %p177 = por %p175, %p176
      %p178 = scmp.ne.s32.totalorder %s167, %s170
      %p179 = scmp.eq.s32.totalorder %s25, 3
      %p180 = por %p178, %p179
      %p181 = scmp.ne.s32.totalorder %s170, %s171
      %p182 = scmp.eq.s32.totalorder %s25, 0
      %p183 = por %p181, %p182
      %p184 = scmp.ne.s32.totalorder %s170, %s171
      %p185 = scmp.eq.s32.totalorder %s26, 3
      %p186 = por %p184, %p185
      %p188 = scmp.ne.s32.totalorder %s171, %s187
      %p189 = scmp.eq.s32.totalorder %s26, 0
      %p190 = por %p188, %p189
      %p191 = scmp.le.s32.totalorder 1, %s20
      %p192 = scmp.lt.s32.totalorder %s20, 5
      %p193 = pnand %p191, %p192
      %p194 = pneg %p193
      // Predicated region
      $region9: #{tpu_custom_call.1} parent=5 // pred_check
        _
      $region10: #{tpu_custom_call.1} parent=5 // pred_check_branch
        %196 = sbr.rel (%p193) target = $region12
      $region11: #{tpu_custom_call.1} parent=5 // pred_region
        %s197 = ssub.s32 %s20, 1
        // Predicated region
        $region13: #{tpu_custom_call.1} parent=11 // pred_check
          %p198 = pneg %p157
        $region14: #{tpu_custom_call.1} parent=11 // pred_check_branch
          %200 = sbr.rel (%p198) target = $region16
        $region15: #{tpu_custom_call.1} parent=11 // pred_region
          _
        $region16: #{tpu_custom_call.1} parent=11 // pred_fallthru
          _
      $region12: #{tpu_custom_call.1} parent=5 // pred_fallthru
        _
      %p201 = scmp.lt.s32.totalorder %s20, 4
      // Predicated region
      $region17: #{tpu_custom_call.1} parent=5 // pred_check
        %p202 = pneg %p201
      $region18: #{tpu_custom_call.1} parent=5 // pred_check_branch
        %204 = sbr.rel (%p202) target = $region20
      $region19: #{tpu_custom_call.1} parent=5 // pred_region
        // Predicated region
        $region21: #{tpu_custom_call.1} parent=19 // pred_check
          %p205 = pneg %p52
        $region22: #{tpu_custom_call.1} parent=19 // pred_check_branch
          %207 = sbr.rel (%p205) target = $region24
        $region23: #{tpu_custom_call.1} parent=19 // pred_region
          %s208 = sand.u32 %s42, 1
          %s209 = scalar_lea.sflag [#allocation4], %s208
          %s210 = sand.u32 %s42, 1
          %s211 = smul.addr %s210, 64
          %s212 = scalar_lea.vmem [#allocation3], %s211
          %s213 = smul.u32 8, %s27
          %s215 = ssub.s32 1024, 1024
          %216 = vsyncadd %s209, %s215
          %s217 = smul.addr %s213, 128
          %s218 = scalar_lea.hbm %s0, %s217
          %s219 = sshll.u32 %s212, 4
          %s220 = int_to_ptr.vmem [resolvable:$true] %s219
          %225 = dma.hbm_to_vmem [thread:$0]  %s218, 1024, %s220, %s209, 128, 128, 8
        $region24: #{tpu_custom_call.1} parent=19 // pred_fallthru
          _
        // Predicated region
        $region25: #{tpu_custom_call.1} parent=19 // pred_check
          %p226 = pneg %p78
        $region26: #{tpu_custom_call.1} parent=19 // pred_check_branch
          %228 = sbr.rel (%p226) target = $region28
        $region27: #{tpu_custom_call.1} parent=19 // pred_region
          %s229 = sand.u32 %s20, 1
          %s230 = scalar_lea.sflag [#allocation7], %s229
          %s231 = sand.u32 %s68, 1
          %s232 = smul.addr %s231, 256
          %s233 = scalar_lea.vmem [#allocation6], %s232
          %s234 = smul.u32 2, %s28
          %s236 = ssub.s32 4096, 4096
          %237 = vsyncadd %s230, %s236
          %s238 = smul.addr %s234, 128
          %s239 = scalar_lea.hbm %s1, %s238
          %s240 = sshll.u32 %s233, 4
          %s241 = int_to_ptr.vmem [resolvable:$true] %s240
          %246 = dma.hbm_to_vmem [thread:$0]  %s239, 4096, %s241, %s230, 512, 256, 16
        $region28: #{tpu_custom_call.1} parent=19 // pred_fallthru
          _
        // Predicated region
        $region29: #{tpu_custom_call.1} parent=19 // pred_check
          %p247 = pneg %p104
        $region30: #{tpu_custom_call.1} parent=19 // pred_check_branch
          %249 = sbr.rel (%p247) target = $region32
        $region31: #{tpu_custom_call.1} parent=19 // pred_region
          %s250 = smul.u32 2, %s28
          %p251 = scmp.lt.s32.totalorder %s250, 3
          %s252 = scalar_select %p251, %s250, 3
          %s253 = scalar_lea.vmem %s2, %s252
          %s254 = smul.u32 2, %s28
        $region32: #{tpu_custom_call.1} parent=19 // pred_fallthru
          _
        // Predicated region
        $region33: #{tpu_custom_call.1} parent=19 // pred_check
          %p255 = pneg %p130
        $region34: #{tpu_custom_call.1} parent=19 // pred_check_branch
          %257 = sbr.rel (%p255) target = $region36
        $region35: #{tpu_custom_call.1} parent=19 // pred_region
          %s258 = sand.u32 %s20, 1
          %s259 = scalar_lea.sflag [#allocation7], %s258
          %s260 = sand.u32 %s120, 1
          %s261 = smul.addr %s260, 256
          %s262 = scalar_lea.vmem [#allocation8], %s261
          %s263 = smul.u32 32, %s28
          %s265 = ssub.s32 4096, 4096
          %266 = vsyncadd %s259, %s265
          %s267 = smul.addr %s263, 128
          %s268 = scalar_lea.hbm %s3, %s267
          %s269 = sshll.u32 %s262, 4
          %s270 = int_to_ptr.vmem [resolvable:$true] %s269
          %275 = dma.hbm_to_vmem [thread:$0]  %s268, 4096, %s270, %s259, 128, 128, 8
        $region36: #{tpu_custom_call.1} parent=19 // pred_fallthru
          _
      $region20: #{tpu_custom_call.1} parent=5 // pred_fallthru
        _
      %p276 = scmp.le.s32.totalorder 1, %s20
      %p277 = scmp.lt.s32.totalorder %s20, 5
      %p278 = pnand %p276, %p277
      %p279 = pneg %p278
      // Predicated region
      $region37: #{tpu_custom_call.1} parent=5 // pred_check
        _
      $region38: #{tpu_custom_call.1} parent=5 // pred_check_branch
        %281 = sbr.rel (%p278) target = $region40
      $region39: #{tpu_custom_call.1} parent=5 // pred_region
        %s282 = ssub.s32 %s20, 1
        %s283 = sand.u32 %s45, 1
        %s284 = scalar_lea.sflag [#allocation4], %s283
        %s285 = sand.u32 %s45, 1
        %s286 = smul.addr %s285, 64
        %s287 = scalar_lea.vmem [#allocation3], %s286
        // Predicated region
        $region41: #{tpu_custom_call.1} parent=39 // pred_check
          %p288 = pneg %p58
        $region42: #{tpu_custom_call.1} parent=39 // pred_check_branch
          %290 = sbr.rel (%p288) target = $region44
        $region43: #{tpu_custom_call.1} parent=39 // pred_region
          %291 = dma.done %s284, 1024
        $region44: #{tpu_custom_call.1} parent=39 // pred_fallthru
          _
        %s292 = sand.u32 %s25, 1
        %s293 = scalar_lea.sflag [#allocation7], %s292
        %s294 = sand.u32 %s71, 1
        %s295 = smul.addr %s294, 256
        %s296 = scalar_lea.vmem [#allocation6], %s295
        // Predicated region
        $region45: #{tpu_custom_call.1} parent=39 // pred_check
          %p297 = pneg %p84
        $region46: #{tpu_custom_call.1} parent=39 // pred_check_branch
          %299 = sbr.rel (%p297) target = $region48
        $region47: #{tpu_custom_call.1} parent=39 // pred_region
          %300 = dma.done %s293, 4096
        $region48: #{tpu_custom_call.1} parent=39 // pred_fallthru
          _
        %s301 = sand.u32 %s25, 1
        %s302 = scalar_lea.sflag [#allocation7], %s301
        %s303 = sand.u32 %s123, 1
        %s304 = smul.addr %s303, 256
        %s305 = scalar_lea.vmem [#allocation8], %s304
        // Predicated region
        $region49: #{tpu_custom_call.1} parent=39 // pred_check
          %p306 = pneg %p136
        $region50: #{tpu_custom_call.1} parent=39 // pred_check_branch
          %308 = sbr.rel (%p306) target = $region52
        $region51: #{tpu_custom_call.1} parent=39 // pred_region
          %309 = dma.done %s302, 4096
        $region52: #{tpu_custom_call.1} parent=39 // pred_fallthru
          _
        %s310 = sand.u32 %s45, 1
        %s311 = scalar_lea.sflag [#allocation4], %s310
        %s312 = sand.u32 %s45, 1
        %s313 = smul.addr %s312, 64
        %s314 = scalar_lea.vmem [#allocation3], %s313
        %p315 = pneg %p58
        %p316 = pneg %p55
        %s317 = sand.u32 %s25, 1
        %s318 = scalar_lea.sflag [#allocation7], %s317
        %s319 = sand.u32 %s71, 1
        %s320 = smul.addr %s319, 256
        %s321 = scalar_lea.vmem [#allocation6], %s320
        %p322 = pneg %p84
        %p323 = pneg %p81
        %s324 = smul.u32 2, %s30
        %p325 = scmp.lt.s32.totalorder %s324, 3
        %s326 = scalar_select %p325, %s324, 3
        %s327 = scalar_lea.vmem %s2, %s326
        %p328 = pneg %p110
        %p329 = pneg %p107
        %s330 = sand.u32 %s25, 1
        %s331 = scalar_lea.sflag [#allocation7], %s330
        %s332 = sand.u32 %s123, 1
        %s333 = smul.addr %s332, 256
        %s334 = scalar_lea.vmem [#allocation8], %s333
        %p335 = pneg %p136
        %p336 = pneg %p133
        %p337 = pneg %p157
        %p338 = pneg %p154
        %p339 = pneg %p183
        %p340 = pneg %p180
        %s341 = sand.u32 %s170, 1
        %s342 = scalar_lea.sflag [#allocation5], %s341
        %s343 = sand.u32 %s170, 1
        %s344 = smul.addr %s343, 64
        %s345 = scalar_lea.vmem [#allocation9], %s344
        %s346 = smul.u32 8, %s29
        %s347 = smul.u32 2, %s30
        %s348 = smul.u32 2, %s30
        %p349 = scmp.lt.s32.totalorder %s348, 3
        %s350 = scalar_select %p349, %s348, 3
        %s351 = scalar_lea.vmem %s2, %s350
        %s352 = smul.u32 2, %s30
        %s353 = smul.u32 32, %s30
        %s354 = smul.u32 8, %s29
        %p355 = scmp.eq.s32.totalorder %s30, 0
        // Predicated region
        $region53: #{tpu_custom_call.1} parent=39 // pred_check
          %p356 = pneg %p355
        $region54: #{tpu_custom_call.1} parent=39 // pred_check_branch
          %358 = sbr.rel (%p356) target = $region56
        $region55: #{tpu_custom_call.1} parent=39 // pred_region
          %359 = vst [vmem:[#allocation2] sm:$0xff] 0.0
          %360 = vst [vmem:[#allocation2 + $0x8] sm:$0xff] 0.0
          %361 = vst [vmem:[#allocation2 + $0x10] sm:$0xff] 0.0
          %362 = vst [vmem:[#allocation2 + $0x18] sm:$0xff] 0.0
          %363 = vst [vmem:[#allocation2 + $0x20] sm:$0xff] 0.0
          %364 = vst [vmem:[#allocation2 + $0x28] sm:$0xff] 0.0
          %365 = vst [vmem:[#allocation2 + $0x30] sm:$0xff] 0.0
          %366 = vst [vmem:[#allocation2 + $0x38] sm:$0xff] 0.0
        $region56: #{tpu_custom_call.1} parent=39 // pred_fallthru
          _
        %v367 = vld [vmem:[%s287] sm:$0xff]
        %v368 = vld [vmem:[%s287 + $0x8] sm:$0xff]
        %v369 = vld [vmem:[%s287 + $0x10] sm:$0xff]
        %v370 = vld [vmem:[%s287 + $0x18] sm:$0xff]
        %v371 = vld [vmem:[%s287 + $0x20] sm:$0xff]
        %v372 = vld [vmem:[%s287 + $0x28] sm:$0xff]
        %v373 = vld [vmem:[%s287 + $0x30] sm:$0xff]
        %v374 = vld [vmem:[%s287 + $0x38] sm:$0xff]
        %v375 = vld [vmem:[%s296] sm:$0xff]
        %v376 = vld [vmem:[%s296 + $0x8] sm:$0xff]
        %v377 = vld [vmem:[%s296 + $0x10] sm:$0xff]
        %v378 = vld [vmem:[%s296 + $0x18] sm:$0xff]
        %v379 = vld [vmem:[%s296 + $0x20] sm:$0xff]
        %v380 = vld [vmem:[%s296 + $0x28] sm:$0xff]
        %v381 = vld [vmem:[%s296 + $0x30] sm:$0xff]
        %v382 = vld [vmem:[%s296 + $0x38] sm:$0xff]
        %v383 = vld [vmem:[%s296 + $0x40] sm:$0xff]
        %v384 = vld [vmem:[%s296 + $0x48] sm:$0xff]
        %v385 = vld [vmem:[%s296 + $0x50] sm:$0xff]
        %v386 = vld [vmem:[%s296 + $0x58] sm:$0xff]
        %v387 = vld [vmem:[%s296 + $0x60] sm:$0xff]
        %v388 = vld [vmem:[%s296 + $0x68] sm:$0xff]
        %v389 = vld [vmem:[%s296 + $0x70] sm:$0xff]
        %v390 = vld [vmem:[%s296 + $0x78] sm:$0xff]
        %v391 = vld [vmem:[%s296 + $0x80] sm:$0xff]
        %v392 = vld [vmem:[%s296 + $0x88] sm:$0xff]
        %v393 = vld [vmem:[%s296 + $0x90] sm:$0xff]
        %v394 = vld [vmem:[%s296 + $0x98] sm:$0xff]
        %v395 = vld [vmem:[%s296 + $0xa0] sm:$0xff]
        %v396 = vld [vmem:[%s296 + $0xa8] sm:$0xff]
        %v397 = vld [vmem:[%s296 + $0xb0] sm:$0xff]
        %v398 = vld [vmem:[%s296 + $0xb8] sm:$0xff]
        %v399 = vld [vmem:[%s296 + $0xc0] sm:$0xff]
        %v400 = vld [vmem:[%s296 + $0xc8] sm:$0xff]
        %v401 = vld [vmem:[%s296 + $0xd0] sm:$0xff]
        %v402 = vld [vmem:[%s296 + $0xd8] sm:$0xff]
        %v403 = vld [vmem:[%s296 + $0xe0] sm:$0xff]
        %v404 = vld [vmem:[%s296 + $0xe8] sm:$0xff]
        %v405 = vld [vmem:[%s296 + $0xf0] sm:$0xff]
        %v406 = vld [vmem:[%s296 + $0xf8] sm:$0xff]
        %v407 = vld [vmem:[%s351] sm:$0x3]
        %v409 = vlaneseq
        %v410 = vshrl.u32 %v409, 7
        %v411 = vsub.s32 0, %v410
        %v412 = vrot.slane %v407, %v411
        %v413 = vlaneseq
        %v414 = vshrl.u32 %v413, 7
        %v415 = vsub.s32 1, %v414
        %v416 = vrot.slane %v407, %v415
        %419 = vmatprep.subr.mxu0 %v376
        %420 = vmatpush1.msra.mxu0 %v375
        %421 = vmatprep.subr.mxu0 %v378
        %422 = vmatpush1.msra.mxu0 %v377
        %423 = vmatprep.subr.mxu0 %v380
        %424 = vmatpush1.msra.mxu0 %v379
        %425 = vmatprep.subr.mxu0 %v382
        %426 = vmatpush1.msra.mxu0 %v381
        %427 = vmatprep.subr.mxu0 %v384
        %428 = vmatpush1.msra.mxu0 %v383
        %429 = vmatprep.subr.mxu0 %v386
        %430 = vmatpush1.msra.mxu0 %v385
        %431 = vmatprep.subr.mxu0 %v388
        %432 = vmatpush1.msra.mxu0 %v387
        %433 = vmatprep.subr.mxu0 %v390
        %434 = vmatpush1.msra.mxu0 %v389
        %435 = vmatprep.subr.mxu0 %v392
        %436 = vmatpush1.msra.mxu0 %v391
        %437 = vmatprep.subr.mxu0 %v394
        %438 = vmatpush1.msra.mxu0 %v393
        %439 = vmatprep.subr.mxu0 %v396
        %440 = vmatpush1.msra.mxu0 %v395
        %441 = vmatprep.subr.mxu0 %v398
        %442 = vmatpush1.msra.mxu0 %v397
        %443 = vmatprep.subr.mxu0 %v400
        %444 = vmatpush1.msra.mxu0 %v399
        %445 = vmatprep.subr.mxu0 %v402
        %446 = vmatpush1.msra.mxu0 %v401
        %447 = vmatprep.subr.mxu0 %v404
        %448 = vmatpush1.msra.mxu0 %v403
        %449 = vmatprep.subr.mxu0 %v406
        %450 = vmatpush1.msra.mxu0 %v405
        %451 = vmatprep.subr.mxu0 0.0
        %452 = vmatpush1.msra.mxu0 0.0
        %453 = vmatprep.subr.mxu0 0.0
        %454 = vmatpush1.msra.mxu0 0.0
        %455 = vmatprep.subr.mxu0 0.0
        %456 = vmatpush1.msra.mxu0 0.0
        %457 = vmatprep.subr.mxu0 0.0
        %458 = vmatpush1.msra.mxu0 0.0
        %459 = vmatprep.subr.mxu0 0.0
        %460 = vmatpush1.msra.mxu0 0.0
        %461 = vmatprep.subr.mxu0 0.0
        %462 = vmatpush1.msra.mxu0 0.0
        %463 = vmatprep.subr.mxu0 0.0
        %464 = vmatpush1.msra.mxu0 0.0
        %465 = vmatprep.subr.mxu0 0.0
        %466 = vmatpush1.msra.mxu0 0.0
        %467 = vmatprep.subr.mxu0 0.0
        %468 = vmatpush1.msra.mxu0 0.0
        %469 = vmatprep.subr.mxu0 0.0
        %470 = vmatpush1.msra.mxu0 0.0
        %471 = vmatprep.subr.mxu0 0.0
        %472 = vmatpush1.msra.mxu0 0.0
        %473 = vmatprep.subr.mxu0 0.0
        %474 = vmatpush1.msra.mxu0 0.0
        %475 = vmatprep.subr.mxu0 0.0
        %476 = vmatpush1.msra.mxu0 0.0
        %477 = vmatprep.subr.mxu0 0.0
        %478 = vmatpush1.msra.mxu0 0.0
        %479 = vmatprep.subr.mxu0 0.0
        %480 = vmatpush1.msra.mxu0 0.0
        %481 = vmatprep.subr.mxu0 0.0
        %482 = vmatpush1.msra.mxu0 0.0
        %483 = vmatprep.mubr.f32.mxu0 0.0
        %484 = vmatmul.mubr.f32.gmra.mrb[0].mxu0 %v367
        %v485 = vpop.f32.mrb[0].mxu0
        %v486 = vadd.f32 %v412, %v485
        %v487 = vpop.f32.mrb[0].mxu0
        %v488 = vadd.f32 %v416, %v487
        %489 = vmatprep.mubr.f32.mxu0 0.0
        %490 = vmatmul.mubr.f32.gmra.mrb[0].mxu0 %v368
        %v491 = vpop.f32.mrb[0].mxu0
        %v492 = vadd.f32 %v412, %v491
        %v493 = vpop.f32.mrb[0].mxu0
        %v494 = vadd.f32 %v416, %v493
        %495 = vmatprep.mubr.f32.mxu0 0.0
        %496 = vmatmul.mubr.f32.gmra.mrb[0].mxu0 %v369
        %v497 = vpop.f32.mrb[0].mxu0
        %v498 = vadd.f32 %v412, %v497
        %v499 = vpop.f32.mrb[0].mxu0
        %v500 = vadd.f32 %v416, %v499
        %501 = vmatprep.mubr.f32.mxu0 0.0
        %502 = vmatmul.mubr.f32.gmra.mrb[0].mxu0 %v370
        %v503 = vpop.f32.mrb[0].mxu0
        %v504 = vadd.f32 %v412, %v503
        %v505 = vpop.f32.mrb[0].mxu0
        %v506 = vadd.f32 %v416, %v505
        %507 = vmatprep.mubr.f32.mxu0 0.0
        %508 = vmatmul.mubr.f32.gmra.mrb[0].mxu0 %v371
        %v509 = vpop.f32.mrb[0].mxu0
        %v510 = vadd.f32 %v412, %v509
        %v511 = vpop.f32.mrb[0].mxu0
        %v512 = vadd.f32 %v416, %v511
        %513 = vmatprep.mubr.f32.mxu0 0.0
        %514 = vmatmul.mubr.f32.gmra.mrb[0].mxu0 %v372
        %v515 = vpop.f32.mrb[0].mxu0
        %v516 = vadd.f32 %v412, %v515
        %v517 = vpop.f32.mrb[0].mxu0
        %v518 = vadd.f32 %v416, %v517
        %519 = vmatprep.mubr.f32.mxu0 0.0
        %520 = vmatmul.mubr.f32.gmra.mrb[0].mxu0 %v373
        %v521 = vpop.f32.mrb[0].mxu0
        %v522 = vadd.f32 %v412, %v521
        %v523 = vpop.f32.mrb[0].mxu0
        %v524 = vadd.f32 %v416, %v523
        %525 = vmatprep.mubr.f32.mxu0 0.0
        %526 = vmatmul.mubr.f32.gmra.mrb[0].mxu0 %v374
        %v527 = vpop.f32.mrb[0].mxu0
        %v528 = vadd.f32 %v412, %v527
        %v529 = vpop.f32.mrb[0].mxu0
        %v530 = vadd.f32 %v416, %v529
        %531 = vdwg.mxu0
        %v532 = vmul.f32 %v486, 0.5
        %v533 = vmul.f32 %v488, 0.5
        %v534 = vmul.f32 %v492, 0.5
        %v535 = vmul.f32 %v494, 0.5
        %v536 = vmul.f32 %v498, 0.5
        %v537 = vmul.f32 %v500, 0.5
        %v538 = vmul.f32 %v504, 0.5
        %v539 = vmul.f32 %v506, 0.5
        %v540 = vmul.f32 %v510, 0.5
        %v541 = vmul.f32 %v512, 0.5
        %v542 = vmul.f32 %v516, 0.5
        %v543 = vmul.f32 %v518, 0.5
        %v544 = vmul.f32 %v522, 0.5
        %v545 = vmul.f32 %v524, 0.5
        %v546 = vmul.f32 %v528, 0.5
        %v547 = vmul.f32 %v530, 0.5
        %v548 = vmul.f32 %v486, 0.70710677
        %v549 = vmul.f32 %v488, 0.70710677
        %v550 = vmul.f32 %v492, 0.70710677
        %v551 = vmul.f32 %v494, 0.70710677
        %v552 = vmul.f32 %v498, 0.70710677
        %v553 = vmul.f32 %v500, 0.70710677
        %v554 = vmul.f32 %v504, 0.70710677
        %v555 = vmul.f32 %v506, 0.70710677
        %v556 = vmul.f32 %v510, 0.70710677
        %v557 = vmul.f32 %v512, 0.70710677
        %v558 = vmul.f32 %v516, 0.70710677
        %v559 = vmul.f32 %v518, 0.70710677
        %v560 = vmul.f32 %v522, 0.70710677
        %v561 = vmul.f32 %v524, 0.70710677
        %v562 = vmul.f32 %v528, 0.70710677
        %v563 = vmul.f32 %v530, 0.70710677
        %v564 = verf.f32.pop %v548
        %v565 = verf.f32.pop %v549
        %v566 = verf.f32.pop %v550
        %v567 = verf.f32.pop %v551
        %v568 = verf.f32.pop %v552
        %v569 = verf.f32.pop %v553
        %v570 = verf.f32.pop %v554
        %v571 = verf.f32.pop %v555
        %v572 = verf.f32.pop %v556
        %v573 = verf.f32.pop %v557
        %v574 = verf.f32.pop %v558
        %v575 = verf.f32.pop %v559
        %v576 = verf.f32.pop %v560
        %v577 = verf.f32.pop %v561
        %v578 = verf.f32.pop %v562
        %v579 = verf.f32.pop %v563
        %v580 = vadd.f32 %v564, 1.0
        %v581 = vadd.f32 %v565, 1.0
        %v582 = vadd.f32 %v566, 1.0
        %v583 = vadd.f32 %v567, 1.0
        %v584 = vadd.f32 %v568, 1.0
        %v585 = vadd.f32 %v569, 1.0
        %v586 = vadd.f32 %v570, 1.0
        %v587 = vadd.f32 %v571, 1.0
        %v588 = vadd.f32 %v572, 1.0
        %v589 = vadd.f32 %v573, 1.0
        %v590 = vadd.f32 %v574, 1.0
        %v591 = vadd.f32 %v575, 1.0
        %v592 = vadd.f32 %v576, 1.0
        %v593 = vadd.f32 %v577, 1.0
        %v594 = vadd.f32 %v578, 1.0
        %v595 = vadd.f32 %v579, 1.0
        %v596 = vmul.f32 %v532, %v580
        %v597 = vmul.f32 %v533, %v581
        %v598 = vmul.f32 %v534, %v582
        %v599 = vmul.f32 %v535, %v583
        %v600 = vmul.f32 %v536, %v584
        %v601 = vmul.f32 %v537, %v585
        %v602 = vmul.f32 %v538, %v586
        %v603 = vmul.f32 %v539, %v587
        %v604 = vmul.f32 %v540, %v588
        %v605 = vmul.f32 %v541, %v589
        %v606 = vmul.f32 %v542, %v590
        %v607 = vmul.f32 %v543, %v591
        %v608 = vmul.f32 %v544, %v592
        %v609 = vmul.f32 %v545, %v593
        %v610 = vmul.f32 %v546, %v594
        %v611 = vmul.f32 %v547, %v595
        %v612 = vld [vmem:[#allocation2] sm:$0xff]
        %v613 = vld [vmem:[#allocation2 + $0x8] sm:$0xff]
        %v614 = vld [vmem:[#allocation2 + $0x10] sm:$0xff]
        %v615 = vld [vmem:[#allocation2 + $0x18] sm:$0xff]
        %v616 = vld [vmem:[#allocation2 + $0x20] sm:$0xff]
        %v617 = vld [vmem:[#allocation2 + $0x28] sm:$0xff]
        %v618 = vld [vmem:[#allocation2 + $0x30] sm:$0xff]
        %v619 = vld [vmem:[#allocation2 + $0x38] sm:$0xff]
        %v620 = vld [vmem:[%s305] sm:$0xff]
        %v621 = vld [vmem:[%s305 + $0x8] sm:$0xff]
        %v622 = vld [vmem:[%s305 + $0x10] sm:$0xff]
        %v623 = vld [vmem:[%s305 + $0x18] sm:$0xff]
        %v624 = vld [vmem:[%s305 + $0x20] sm:$0xff]
        %v625 = vld [vmem:[%s305 + $0x28] sm:$0xff]
        %v626 = vld [vmem:[%s305 + $0x30] sm:$0xff]
        %v627 = vld [vmem:[%s305 + $0x38] sm:$0xff]
        %v628 = vld [vmem:[%s305 + $0x40] sm:$0xff]
        %v629 = vld [vmem:[%s305 + $0x48] sm:$0xff]
        %v630 = vld [vmem:[%s305 + $0x50] sm:$0xff]
        %v631 = vld [vmem:[%s305 + $0x58] sm:$0xff]
        %v632 = vld [vmem:[%s305 + $0x60] sm:$0xff]
        %v633 = vld [vmem:[%s305 + $0x68] sm:$0xff]
        %v634 = vld [vmem:[%s305 + $0x70] sm:$0xff]
        %v635 = vld [vmem:[%s305 + $0x78] sm:$0xff]
        %v636 = vld [vmem:[%s305 + $0x80] sm:$0xff]
        %v637 = vld [vmem:[%s305 + $0x88] sm:$0xff]
        %v638 = vld [vmem:[%s305 + $0x90] sm:$0xff]
        %v639 = vld [vmem:[%s305 + $0x98] sm:$0xff]
        %v640 = vld [vmem:[%s305 + $0xa0] sm:$0xff]
        %v641 = vld [vmem:[%s305 + $0xa8] sm:$0xff]
        %v642 = vld [vmem:[%s305 + $0xb0] sm:$0xff]
        %v643 = vld [vmem:[%s305 + $0xb8] sm:$0xff]
        %v644 = vld [vmem:[%s305 + $0xc0] sm:$0xff]
        %v645 = vld [vmem:[%s305 + $0xc8] sm:$0xff]
        %v646 = vld [vmem:[%s305 + $0xd0] sm:$0xff]
        %v647 = vld [vmem:[%s305 + $0xd8] sm:$0xff]
        %v648 = vld [vmem:[%s305 + $0xe0] sm:$0xff]
        %v649 = vld [vmem:[%s305 + $0xe8] sm:$0xff]
        %v650 = vld [vmem:[%s305 + $0xf0] sm:$0xff]
        %v651 = vld [vmem:[%s305 + $0xf8] sm:$0xff]
        %652 = vmatprep.subr.mxu0 0.0
        %653 = vmatpush1.msra.mxu0 %v620
        %654 = vmatprep.subr.mxu0 0.0
        %655 = vmatpush1.msra.mxu0 %v621
        %656 = vmatprep.subr.mxu0 0.0
        %657 = vmatpush1.msra.mxu0 %v622
        %658 = vmatprep.subr.mxu0 0.0
        %659 = vmatpush1.msra.mxu0 %v623
        %660 = vmatprep.subr.mxu0 0.0
        %661 = vmatpush1.msra.mxu0 %v624
        %662 = vmatprep.subr.mxu0 0.0
        %663 = vmatpush1.msra.mxu0 %v625
        %664 = vmatprep.subr.mxu0 0.0
        %665 = vmatpush1.msra.mxu0 %v626
        %666 = vmatprep.subr.mxu0 0.0
        %667 = vmatpush1.msra.mxu0 %v627
        %668 = vmatprep.subr.mxu0 0.0
        %669 = vmatpush1.msra.mxu0 %v628
        %670 = vmatprep.subr.mxu0 0.0
        %671 = vmatpush1.msra.mxu0 %v629
        %672 = vmatprep.subr.mxu0 0.0
        %673 = vmatpush1.msra.mxu0 %v630
        %674 = vmatprep.subr.mxu0 0.0
        %675 = vmatpush1.msra.mxu0 %v631
        %676 = vmatprep.subr.mxu0 0.0
        %677 = vmatpush1.msra.mxu0 %v632
        %678 = vmatprep.subr.mxu0 0.0
        %679 = vmatpush1.msra.mxu0 %v633
        %680 = vmatprep.subr.mxu0 0.0
        %681 = vmatpush1.msra.mxu0 %v634
        %682 = vmatprep.subr.mxu0 0.0
        %683 = vmatpush1.msra.mxu0 %v635
        %684 = vmatprep.subr.mxu0 0.0
        %685 = vmatpush1.msra.mxu0 %v636
        %686 = vmatprep.subr.mxu0 0.0
        %687 = vmatpush1.msra.mxu0 %v637
        %688 = vmatprep.subr.mxu0 0.0
        %689 = vmatpush1.msra.mxu0 %v638
        %690 = vmatprep.subr.mxu0 0.0
        %691 = vmatpush1.msra.mxu0 %v639
        %692 = vmatprep.subr.mxu0 0.0
        %693 = vmatpush1.msra.mxu0 %v640
        %694 = vmatprep.subr.mxu0 0.0
        %695 = vmatpush1.msra.mxu0 %v641
        %696 = vmatprep.subr.mxu0 0.0
        %697 = vmatpush1.msra.mxu0 %v642
        %698 = vmatprep.subr.mxu0 0.0
        %699 = vmatpush1.msra.mxu0 %v643
        %700 = vmatprep.subr.mxu0 0.0
        %701 = vmatpush1.msra.mxu0 %v644
        %702 = vmatprep.subr.mxu0 0.0
        %703 = vmatpush1.msra.mxu0 %v645
        %704 = vmatprep.subr.mxu0 0.0
        %705 = vmatpush1.msra.mxu0 %v646
        %706 = vmatprep.subr.mxu0 0.0
        %707 = vmatpush1.msra.mxu0 %v647
        %708 = vmatprep.subr.mxu0 0.0
        %709 = vmatpush1.msra.mxu0 %v648
        %710 = vmatprep.subr.mxu0 0.0
        %711 = vmatpush1.msra.mxu0 %v649
        %712 = vmatprep.subr.mxu0 0.0
        %713 = vmatpush1.msra.mxu0 %v650
        %714 = vmatprep.subr.mxu0 0.0
        %715 = vmatpush1.msra.mxu0 %v651
        %716 = vmatprep.mubr.f32.mxu0 %v597
        %717 = vmatmul.mubr.f32.gmra.mrb[0].mxu0 %v596
        %v718 = vpop.f32.mrb[0].mxu0
        %v719 = vadd.f32 0.0, %v718
        %v720 = vpop.f32.mrb[0].mxu0
        %721 = vmatprep.mubr.f32.mxu0 %v599
        %722 = vmatmul.mubr.f32.gmra.mrb[0].mxu0 %v598
        %v723 = vpop.f32.mrb[0].mxu0
        %v724 = vadd.f32 0.0, %v723
        %v725 = vpop.f32.mrb[0].mxu0
        %726 = vmatprep.mubr.f32.mxu0 %v601
        %727 = vmatmul.mubr.f32.gmra.mrb[0].mxu0 %v600
        %v728 = vpop.f32.mrb[0].mxu0
        %v729 = vadd.f32 0.0, %v728
        %v730 = vpop.f32.mrb[0].mxu0
        %731 = vmatprep.mubr.f32.mxu0 %v603
        %732 = vmatmul.mubr.f32.gmra.mrb[0].mxu0 %v602
        %v733 = vpop.f32.mrb[0].mxu0
        %v734 = vadd.f32 0.0, %v733
        %v735 = vpop.f32.mrb[0].mxu0
        %736 = vmatprep.mubr.f32.mxu0 %v605
        %737 = vmatmul.mubr.f32.gmra.mrb[0].mxu0 %v604
        %v738 = vpop.f32.mrb[0].mxu0
        %v739 = vadd.f32 0.0, %v738
        %v740 = vpop.f32.mrb[0].mxu0
        %741 = vmatprep.mubr.f32.mxu0 %v607
        %742 = vmatmul.mubr.f32.gmra.mrb[0].mxu0 %v606
        %v743 = vpop.f32.mrb[0].mxu0
        %v744 = vadd.f32 0.0, %v743
        %v745 = vpop.f32.mrb[0].mxu0
        %746 = vmatprep.mubr.f32.mxu0 %v609
        %747 = vmatmul.mubr.f32.gmra.mrb[0].mxu0 %v608
        %v748 = vpop.f32.mrb[0].mxu0
        %v749 = vadd.f32 0.0, %v748
        %v750 = vpop.f32.mrb[0].mxu0
        %751 = vmatprep.mubr.f32.mxu0 %v611
        %752 = vmatmul.mubr.f32.gmra.mrb[0].mxu0 %v610
        %v753 = vpop.f32.mrb[0].mxu0
        %v754 = vadd.f32 0.0, %v753
        %v755 = vpop.f32.mrb[0].mxu0
        %756 = vdwg.mxu0
        %v757 = vadd.f32 %v612, %v719
        %v758 = vadd.f32 %v613, %v724
        %v759 = vadd.f32 %v614, %v729
        %v760 = vadd.f32 %v615, %v734
        %v761 = vadd.f32 %v616, %v739
        %v762 = vadd.f32 %v617, %v744
        %v763 = vadd.f32 %v618, %v749
        %v764 = vadd.f32 %v619, %v754
        %765 = vst [vmem:[#allocation2] sm:$0xff] %v757
        %766 = vst [vmem:[#allocation2 + $0x8] sm:$0xff] %v758
        %767 = vst [vmem:[#allocation2 + $0x10] sm:$0xff] %v759
        %768 = vst [vmem:[#allocation2 + $0x18] sm:$0xff] %v760
        %769 = vst [vmem:[#allocation2 + $0x20] sm:$0xff] %v761
        %770 = vst [vmem:[#allocation2 + $0x28] sm:$0xff] %v762
        %771 = vst [vmem:[#allocation2 + $0x30] sm:$0xff] %v763
        %772 = vst [vmem:[#allocation2 + $0x38] sm:$0xff] %v764
        %p773 = scmp.eq.s32.totalorder %s30, 1
        // Predicated region
        $region57: #{tpu_custom_call.1} parent=39 // pred_check
          %p774 = pneg %p773
        $region58: #{tpu_custom_call.1} parent=39 // pred_check_branch
          %776 = sbr.rel (%p774) target = $region60
        $region59: #{tpu_custom_call.1} parent=39 // pred_region
          %v777 = vld [vmem:[#allocation2] sm:$0xff]
          %v778 = vld [vmem:[#allocation2 + $0x8] sm:$0xff]
          %v779 = vld [vmem:[#allocation2 + $0x10] sm:$0xff]
          %v780 = vld [vmem:[#allocation2 + $0x18] sm:$0xff]
          %v781 = vld [vmem:[#allocation2 + $0x20] sm:$0xff]
          %v782 = vld [vmem:[#allocation2 + $0x28] sm:$0xff]
          %v783 = vld [vmem:[#allocation2 + $0x30] sm:$0xff]
          %v784 = vld [vmem:[#allocation2 + $0x38] sm:$0xff]
          %v785 = vld [vmem:[%s4] sm:$0x1]
          %v787 = vlaneseq
          %v788 = vshrl.u32 %v787, 7
          %v789 = vsub.s32 0, %v788
          %v790 = vrot.slane %v785, %v789
          %v792 = vadd.f32 %v777, %v790
          %v793 = vadd.f32 %v778, %v790
          %v794 = vadd.f32 %v779, %v790
          %v795 = vadd.f32 %v780, %v790
          %v796 = vadd.f32 %v781, %v790
          %v797 = vadd.f32 %v782, %v790
          %v798 = vadd.f32 %v783, %v790
          %v799 = vadd.f32 %v784, %v790
          %800 = vst [vmem:[%s345] sm:$0xff] %v792
          %801 = vst [vmem:[%s345 + $0x8] sm:$0xff] %v793
          %802 = vst [vmem:[%s345 + $0x10] sm:$0xff] %v794
          %803 = vst [vmem:[%s345 + $0x18] sm:$0xff] %v795
          %804 = vst [vmem:[%s345 + $0x20] sm:$0xff] %v796
          %805 = vst [vmem:[%s345 + $0x28] sm:$0xff] %v797
          %806 = vst [vmem:[%s345 + $0x30] sm:$0xff] %v798
          %807 = vst [vmem:[%s345 + $0x38] sm:$0xff] %v799
        $region60: #{tpu_custom_call.1} parent=39 // pred_fallthru
          _
        %s808 = sand.u32 %s170, 1
        %s809 = scalar_lea.sflag [#allocation5], %s808
        %s810 = sand.u32 %s170, 1
        %s811 = smul.addr %s810, 64
        %s812 = scalar_lea.vmem [#allocation9], %s811
        // Predicated region
        $region61: #{tpu_custom_call.1} parent=39 // pred_check
          %p813 = pneg %p180
        $region62: #{tpu_custom_call.1} parent=39 // pred_check_branch
          %815 = sbr.rel (%p813) target = $region64
        $region63: #{tpu_custom_call.1} parent=39 // pred_region
          %s816 = smul.u32 8, %s29
          %s818 = ssub.s32 1024, 1024
          %819 = vsyncadd %s809, %s818
          %s820 = smul.addr %s816, 128
          %s821 = scalar_lea.hbm %s5, %s820
          %s822 = sshll.u32 %s812, 4
          %s823 = int_to_ptr.vmem [resolvable:$true] %s822
          %828 = dma.vmem_to_hbm [thread:$0]  %s823, 1024, %s821, %s809, 128, 128, 8
        $region64: #{tpu_custom_call.1} parent=39 // pred_fallthru
          _
      $region40: #{tpu_custom_call.1} parent=5 // pred_fallthru
        _
      %p829 = scmp.le.s32.totalorder 2, %s20
      // Predicated region
      $region65: #{tpu_custom_call.1} parent=5 // pred_check
        %p830 = pneg %p829
      $region66: #{tpu_custom_call.1} parent=5 // pred_check_branch
        %832 = sbr.rel (%p830) target = $region68
      $region67: #{tpu_custom_call.1} parent=5 // pred_region
        %s833 = ssub.s32 %s20, 2
        // Predicated region
        $region69: #{tpu_custom_call.1} parent=67 // pred_check
          %p834 = pneg %p186
        $region70: #{tpu_custom_call.1} parent=67 // pred_check_branch
          %836 = sbr.rel (%p834) target = $region72
        $region71: #{tpu_custom_call.1} parent=67 // pred_region
          %s837 = sand.u32 %s171, 1
          %s838 = scalar_lea.sflag [#allocation5], %s837
          %s839 = sand.u32 %s171, 1
          %s840 = smul.addr %s839, 64
          %s841 = scalar_lea.vmem [#allocation9], %s840
          %842 = dma.done %s838, 1024
        $region72: #{tpu_custom_call.1} parent=67 // pred_fallthru
          _
      $region68: #{tpu_custom_call.1} parent=5 // pred_fallthru
        _
    $region6: #{tpu_custom_call.1} parent=1 // loop_footer
      %s24 = sadd.s32 1, %s20
    $region7: #{tpu_custom_call.1} parent=1 // loop_footer_branch
      %19 = sbr.rel target = $region3
    $region8: #{tpu_custom_call.1} parent=1 // loop_exit
      _
    %843 = vsyncpa [#allocation4], 1
    %s844 = scalar_lea.sflag [#allocation4], 1
    %845 = vsyncpa %s844, 1
    %846 = vsyncpa [#allocation7], 1
    %s847 = scalar_lea.sflag [#allocation7], 1
    %848 = vsyncpa %s847, 1
    %849 = vsyncpa [#allocation5], 1
    %s850 = scalar_lea.sflag [#allocation5], 1
    %851 = vsyncpa %s850, 1

</llo_original>
